<compile_context>
chip_gen: v7x
topology: tpu7x:2x2x1
jax: 0.10.0
libtpu: 0.0.40
codegen_flags: <defaults>
</compile_context>

<pallas_src>
import jax
import jax.numpy as jnp
from jax.experimental import pallas as pl
from jax.experimental.pallas import tpu as pltpu


def _crf_kernel(x_ref, w_ref, bt_ref, o_ref):
    # x_ref:  (TM, G*H)     row tile of (grouped) flattened features
    # w_ref:  (G*H, G*T*T)  block-diagonal pre-tiled emission weight (resident)
    # bt_ref: (1, G*T*T)    bias + transitions, repeated G times (resident)
    # o_ref:  (TM, G*T*T)   lane-dense output tile (flattened (T, T) blocks)
    acc = jnp.dot(x_ref[...], w_ref[...], preferred_element_type=jnp.float32)
    o_ref[...] = (acc + bt_ref[...]).astype(o_ref.dtype)


def _choose_tile_rows(rows, in_row_bytes, out_row_bytes,
                      budget_bytes=16 * 1024 * 1024):
    """Largest power-of-two row tile that divides `rows`, is sublane-aligned,
    fits a double-buffered VMEM budget (v7x-safe), and (when possible) keeps
    the grid >= 2 steps so the parallel axis shards across two TensorCores."""
    candidates = [4096, 2048, 1024, 512, 256, 128, 64, 32, 16, 8]
    feasible = []
    for c in candidates:
        if c > rows or rows % c != 0:
            continue
        need = 2 * c * (in_row_bytes + out_row_bytes)  # double-buffered in+out
        if need <= budget_bytes:
            feasible.append(c)
    if not feasible:
        # Single full-extent block (block_shape == array dims is always legal).
        return rows
    multi = [c for c in feasible if rows // c >= 2]
    return max(multi) if multi else max(feasible)


def crf_forward(features, w_emission, b_emission, transitions,
                *, out_dtype=jnp.float32, tile_rows=None):
    """features:    (B, S, H) float32
       w_emission:  (T, H)  (PyTorch Linear weight layout)
       b_emission:  (T,)
       transitions: (T, T)
       returns:     (B, S, T, T) in `out_dtype`
    """
    B, S, H = features.shape
    T = transitions.shape[0]
    TT = T * T
    rows = B * S

    # Fold the (T, T) broadcast into the weights / bias (tiny, done once in XLA):
    #   W_tiled[:, i*T + j]   = W[j, :]
    #   bias_trans[0, i*T+j]  = b[j] + transitions[i, j]
    w_t = w_emission.astype(jnp.float32).T                    # (H, T)
    w_tiled = jnp.tile(w_t, (1, T))                           # (H, T*T)
    bias_trans = (jnp.tile(b_emission.reshape(1, T), (1, T))
                  + transitions.reshape(1, TT)).astype(jnp.float32)

    # Group G consecutive rows into one lane-dense (width >= 128) output row.
    if TT % 128 == 0:
        G = 1                                   # already lane-dense
    elif 128 % TT == 0 and rows % (128 // TT) == 0:
        G = 128 // TT
    else:
        G = 1                                   # TODO(synk): masked stores in this fallback
    GH, GTT = G * H, G * TT
    g_rows = rows // G

    x_flat = features.astype(jnp.float32).reshape(g_rows, GH)   # free reshape
    if G > 1:
        w_big = jnp.kron(jnp.eye(G, dtype=jnp.float32), w_tiled)   # (G*H, G*TT) block-diag
        bias_big = jnp.tile(bias_trans, (1, G))                    # (1, G*TT)
    else:
        w_big, bias_big = w_tiled, bias_trans

    out_itemsize = jnp.dtype(out_dtype).itemsize
    in_row_bytes = GH * 4
    out_row_bytes = GTT * out_itemsize
    if tile_rows is None:
        tile_rows = _choose_tile_rows(g_rows, in_row_bytes, out_row_bytes)
    assert g_rows % tile_rows == 0, "grouped row count must be divisible by tile_rows"

    grid = (g_rows // tile_rows,)

    cost = pl.CostEstimate(
        flops=2 * g_rows * GH * GTT,
        transcendentals=0,
        bytes_accessed=g_rows * (in_row_bytes + out_row_bytes) + GH * GTT * 4 + GTT * 4,
    )

    out_flat = pl.pallas_call(
        _crf_kernel,
        out_shape=jax.ShapeDtypeStruct((g_rows, GTT), out_dtype),
        grid_spec=pltpu.PrefetchScalarGridSpec(
            num_scalar_prefetch=0,
            grid=grid,
            in_specs=[
                pl.BlockSpec((tile_rows, GH), lambda r: (r, 0)),   # feature rows
                pl.BlockSpec((GH, GTT), lambda r: (0, 0)),         # block-diag weights (resident)
                pl.BlockSpec((1, GTT), lambda r: (0, 0)),          # bias + transitions (resident)
            ],
            out_specs=pl.BlockSpec((tile_rows, GTT), lambda r: (r, 0)),
        ),
        compiler_params=pltpu.CompilerParams(
            dimension_semantics=("parallel",),
            vmem_limit_bytes=32 * 1024 * 1024,   # safe on v5e/v6e/v7x
        ),
        cost_estimate=cost,
    )(x_flat, w_big, bias_big)

    # (g_rows, G*TT) and (rows, TT) share the same contiguous layout.
    return out_flat.reshape(B, S, T, T)


def crf_forward_ref(features, w_emission, b_emission, transitions):
    """Pure-JAX reference with identical semantics to the PyTorch module."""
    emission = jnp.einsum("bsh,th->bst", features, w_emission) + b_emission   # (B,S,T)
    return emission[:, :, None, :] + transitions[None, None, :, :]            # (B,S,T,T)


if __name__ == "__main__":
    # Small, deterministic shapes consistent with the module's forward:
    # batch=2, seq=8, hidden=32, tagset=8.
    B, S, H, T = 2, 8, 32, 8

    key = jax.random.PRNGKey(0)
    k_feat, k_w, k_b, k_trans = jax.random.split(key, 4)

    features = jax.random.normal(k_feat, (B, S, H), dtype=jnp.float32)
    # Emission Linear params (PyTorch Linear: weight (T, H), bias (T,)).
    w_emission = jax.random.normal(k_w, (T, H), dtype=jnp.float32) * 0.1
    b_emission = jax.random.normal(k_b, (T,), dtype=jnp.float32) * 0.1
    # NOTE: the module zeros `transitions` in __init__; we use deterministic
    # random values here so the broadcast-add path is actually exercised.
    transitions = jax.random.normal(k_trans, (T, T), dtype=jnp.float32) * 0.1

    out = crf_forward(features, w_emission, b_emission, transitions)
    out = jax.block_until_ready(out)

    ref = crf_forward_ref(features, w_emission, b_emission, transitions)
    assert out.shape == (B, S, T, T), out.shape
    assert jnp.allclose(out, ref, atol=1e-5, rtol=1e-5), "mismatch vs reference"

    print("KERNEL_OK")
</pallas_src>

<mosaic_0001>
module attributes {stable_mosaic.version = 11 : i64} {
  func.func @_crf_kernel(%arg0: i32, %arg1: memref<8x64xf32, #tpu.memory_space<vmem>>, %arg2: memref<64x128xf32, #tpu.memory_space<vmem>>, %arg3: memref<1x128xf32, #tpu.memory_space<vmem>>, %arg4: memref<8x128xf32, #tpu.memory_space<vmem>>) attributes {dimension_semantics = [#tpu.dimension_semantics<parallel>], iteration_bounds = array<i64: 1>, scalar_prefetch = 0 : i64, scratch_operands = 0 : i64, tpu.core_type = #tpu.core_type<tc>, window_params = [{transform_indices = @transform_0, window_bounds = array<i64: 8, 64>}, {pipeline_mode = #tpu.pipeline_mode<synchronous>, transform_indices = @transform_1, window_bounds = array<i64: 64, 128>}, {pipeline_mode = #tpu.pipeline_mode<synchronous>, transform_indices = @transform_2, window_bounds = array<i64: 1, 128>}, {transform_indices = @transform_3, window_bounds = array<i64: 8, 128>}]} {
    %c0 = arith.constant 0 : index
    %c0_0 = arith.constant 0 : index
    %0 = vector.load %arg1[%c0, %c0_0] : memref<8x64xf32, #tpu.memory_space<vmem>>, vector<8x64xf32>
    %c0_1 = arith.constant 0 : index
    %c0_2 = arith.constant 0 : index
    %1 = vector.load %arg2[%c0_1, %c0_2] : memref<64x128xf32, #tpu.memory_space<vmem>>, vector<64x128xf32>
    %cst = arith.constant dense<0.000000e+00> : vector<8x128xf32>
    %2 = tpu.matmul %0, %1, %cst {dimension_numbers = #tpu.dot_dimension_numbers<[1], [0], [0], [1], [0, 0, 1, 1], [], []>} : vector<8x64xf32>, vector<64x128xf32>, vector<8x128xf32> -> vector<8x128xf32>
    %c0_3 = arith.constant 0 : index
    %c0_4 = arith.constant 0 : index
    %3 = vector.load %arg3[%c0_3, %c0_4] : memref<1x128xf32, #tpu.memory_space<vmem>>, vector<1x128xf32>
    %4 = vector.broadcast %3 : vector<1x128xf32> to vector<8x128xf32>
    %5 = arith.addf %2, %4 : vector<8x128xf32>
    %c0_5 = arith.constant 0 : index
    %c0_6 = arith.constant 0 : index
    %6 = vector.load %arg4[%c0_5, %c0_6] : memref<8x128xf32, #tpu.memory_space<vmem>>, vector<8x128xf32>
    tpu.vector_store %arg4[%c0_5, %c0_6], %5 {strides = array<i32>} : memref<8x128xf32, #tpu.memory_space<vmem>>, vector<8x128xf32>,
    return
  }
  func.func @transform_0(%arg0: i32) -> (i32, i32) {
    %c0_i32 = arith.constant 0 : i32
    %c0_i32_0 = arith.constant 0 : i32
    return %arg0, %c0_i32 : i32, i32
  }
  func.func @transform_1(%arg0: i32) -> (i32, i32) {
    %c0_i32 = arith.constant 0 : i32
    %c0_i32_0 = arith.constant 0 : i32
    %c0_i32_1 = arith.constant 0 : i32
    return %c0_i32, %c0_i32_0 : i32, i32
  }
  func.func @transform_2(%arg0: i32) -> (i32, i32) {
    %c0_i32 = arith.constant 0 : i32
    %c0_i32_0 = arith.constant 0 : i32
    %c0_i32_1 = arith.constant 0 : i32
    return %c0_i32, %c0_i32_0 : i32, i32
  }
  func.func @transform_3(%arg0: i32) -> (i32, i32) {
    %c0_i32 = arith.constant 0 : i32
    %c0_i32_0 = arith.constant 0 : i32
    return %arg0, %c0_i32 : i32, i32
  }
}

</mosaic_0001>

<llo_original>
// kernel: tpu_custom_call.1
$region0: #{tpu_custom_call.1}
  #allocation0 [shape = 'u32[]', space=smem, size = 0x4, offset = 0x4, fixed_abs, tag = 'smem constant byte address 0x4 - core index']
  #allocation1 [shape = 'u32[144,128]{1,0:T(1,128)}', space=vmem, size = 0x12000, scoped, tag = 'internal scratch']
  %s0 = inlined_call_operand.hbm [shape: f32[8,64], index: 0, kind: input, shape index: {}]
  %s1 = inlined_call_operand.hbm [shape: f32[64,128], index: 1, kind: input, shape index: {}]
  %s2 = inlined_call_operand.vmem [shape: f32[1,128], index: 2, kind: input, shape index: {}]
  %s3 = inlined_call_operand.hbm [shape: f32[8,128], index: 3, kind: output, shape index: {}]
  %s4 = sld [smem:[#allocation0]]
  $region30: #{tpu_custom_call.1} parent=0
    _
  %s6 = ssub.s32 1, %s4
  %s7 = scalar_select 0, %s6, %s4
  $region1: #{tpu_custom_call.1} parent=0
    #allocation2 [shape = 'u8[4096]{0}', space=vmem, size = 0x1000, scoped, tag = 'input window, operand 0, single buffered']
    #allocation3 [shape = 's32[1]{0}', space=sflag, size = 0x4, scoped, tag = 'scoped memory for tpu_custom_call.1']
    #allocation4 [shape = 's32[1]{0}', space=sflag, size = 0x4, scoped, tag = 'scoped memory for tpu_custom_call.1']
    #allocation5 [shape = 'u8[32768]{0}', space=vmem, size = 0x8000, scoped, tag = 'input window, operand 1, single buffered']
    #allocation6 [shape = 's32[1]{0}', space=sflag, size = 0x4, scoped, tag = 'scoped memory for tpu_custom_call.1']
    #allocation7 [shape = 'u8[4096]{0}', space=vmem, size = 0x1000, scoped, tag = 'output window, operand 0, single buffered']
    %8 = vsyncpa [#allocation3], 0
    %9 = vsyncpa [#allocation6], 0
    %10 = vsyncpa [#allocation4], 0
    // Predicated region
    $region2: #{tpu_custom_call.1} parent=1 // pred_check
      _
    $region3: #{tpu_custom_call.1} parent=1 // pred_check_branch
      %12 = sbr.rel (0) target = $region5
    $region4: #{tpu_custom_call.1} parent=1 // pred_region
      %s14 = ssub.s32 128, 128
      %15 = vsyncadd [#allocation3], %s14
      %s17 = sshll.u32 [#allocation2], 4
      %s18 = int_to_ptr.vmem [resolvable:$true] %s17
      %20 = dma.hbm_to_vmem [thread:$0]  %s0, 128, %s18, [#allocation3]
    $region5: #{tpu_custom_call.1} parent=1 // pred_fallthru
      _
    // Predicated region
    $region6: #{tpu_custom_call.1} parent=1 // pred_check
      _
    $region7: #{tpu_custom_call.1} parent=1 // pred_check_branch
      %22 = sbr.rel (0) target = $region9
    $region8: #{tpu_custom_call.1} parent=1 // pred_region
      %s24 = ssub.s32 1024, 1024
      %25 = vsyncadd [#allocation6], %s24
      %s26 = sshll.u32 [#allocation5], 4
      %s27 = int_to_ptr.vmem [resolvable:$true] %s26
      %32 = dma.hbm_to_vmem [thread:$0]  %s1, 1024, %s27, [#allocation6], 128, 128, 8
    $region9: #{tpu_custom_call.1} parent=1 // pred_fallthru
      _
    // Predicated region
    $region10: #{tpu_custom_call.1} parent=1 // pred_check
      _
    $region11: #{tpu_custom_call.1} parent=1 // pred_check_branch
      %34 = sbr.rel (0) target = $region13
    $region12: #{tpu_custom_call.1} parent=1 // pred_region
      _
    $region13: #{tpu_custom_call.1} parent=1 // pred_fallthru
      _
    // Predicated region
    $region14: #{tpu_custom_call.1} parent=1 // pred_check
      _
    $region15: #{tpu_custom_call.1} parent=1 // pred_check_branch
      %36 = sbr.rel (0) target = $region17
    $region16: #{tpu_custom_call.1} parent=1 // pred_region
      %37 = dma.done [#allocation3], 128
    $region17: #{tpu_custom_call.1} parent=1 // pred_fallthru
      _
    // Predicated region
    $region18: #{tpu_custom_call.1} parent=1 // pred_check
      _
    $region19: #{tpu_custom_call.1} parent=1 // pred_check_branch
      %39 = sbr.rel (0) target = $region21
    $region20: #{tpu_custom_call.1} parent=1 // pred_region
      %40 = dma.done [#allocation6], 1024
    $region21: #{tpu_custom_call.1} parent=1 // pred_fallthru
      _
    %v41 = vld [vmem:[#allocation2] sm:$0xff]
    %v42 = vld [vmem:[#allocation5] sm:$0xff]
    %v43 = vld [vmem:[#allocation5 + $0x8] sm:$0xff]
    %v44 = vld [vmem:[#allocation5 + $0x10] sm:$0xff]
    %v45 = vld [vmem:[#allocation5 + $0x18] sm:$0xff]
    %v46 = vld [vmem:[#allocation5 + $0x20] sm:$0xff]
    %v47 = vld [vmem:[#allocation5 + $0x28] sm:$0xff]
    %v48 = vld [vmem:[#allocation5 + $0x30] sm:$0xff]
    %v49 = vld [vmem:[#allocation5 + $0x38] sm:$0xff]
    %v50 = vld [vmem:[%s2] sm:$0x1]
    %v52 = vlaneseq
    %v53 = vshrl.u32 %v52, 7
    %v54 = vsub.s32 0, %v53
    %v55 = vrot.slane %v50, %v54
    %vm57 = vcmask 523264
    %v59 = vsel %vm57, %v41, 0
    %61 = vmatprep.subr.mxu0 0.0
    %62 = vmatpush1.msra.mxu0 %v42
    %63 = vmatprep.subr.mxu0 0.0
    %64 = vmatpush1.msra.mxu0 %v43
    %65 = vmatprep.subr.mxu0 0.0
    %66 = vmatpush1.msra.mxu0 %v44
    %67 = vmatprep.subr.mxu0 0.0
    %68 = vmatpush1.msra.mxu0 %v45
    %69 = vmatprep.subr.mxu0 0.0
    %70 = vmatpush1.msra.mxu0 %v46
    %71 = vmatprep.subr.mxu0 0.0
    %72 = vmatpush1.msra.mxu0 %v47
    %73 = vmatprep.subr.mxu0 0.0
    %74 = vmatpush1.msra.mxu0 %v48
    %75 = vmatprep.subr.mxu0 0.0
    %76 = vmatpush1.msra.mxu0 %v49
    %77 = vmatprep.subr.mxu0 0.0
    %78 = vmatpush1.msra.mxu0 0.0
    %79 = vmatprep.subr.mxu0 0.0
    %80 = vmatpush1.msra.mxu0 0.0
    %81 = vmatprep.subr.mxu0 0.0
    %82 = vmatpush1.msra.mxu0 0.0
    %83 = vmatprep.subr.mxu0 0.0
    %84 = vmatpush1.msra.mxu0 0.0
    %85 = vmatprep.subr.mxu0 0.0
    %86 = vmatpush1.msra.mxu0 0.0
    %87 = vmatprep.subr.mxu0 0.0
    %88 = vmatpush1.msra.mxu0 0.0
    %89 = vmatprep.subr.mxu0 0.0
    %90 = vmatpush1.msra.mxu0 0.0
    %91 = vmatprep.subr.mxu0 0.0
    %92 = vmatpush1.msra.mxu0 0.0
    %93 = vmatprep.subr.mxu0 0.0
    %94 = vmatpush1.msra.mxu0 0.0
    %95 = vmatprep.subr.mxu0 0.0
    %96 = vmatpush1.msra.mxu0 0.0
    %97 = vmatprep.subr.mxu0 0.0
    %98 = vmatpush1.msra.mxu0 0.0
    %99 = vmatprep.subr.mxu0 0.0
    %100 = vmatpush1.msra.mxu0 0.0
    %101 = vmatprep.subr.mxu0 0.0
    %102 = vmatpush1.msra.mxu0 0.0
    %103 = vmatprep.subr.mxu0 0.0
    %104 = vmatpush1.msra.mxu0 0.0
    %105 = vmatprep.subr.mxu0 0.0
    %106 = vmatpush1.msra.mxu0 0.0
    %107 = vmatprep.subr.mxu0 0.0
    %108 = vmatpush1.msra.mxu0 0.0
    %109 = vmatprep.subr.mxu0 0.0
    %110 = vmatpush1.msra.mxu0 0.0
    %111 = vmatprep.subr.mxu0 0.0
    %112 = vmatpush1.msra.mxu0 0.0
    %113 = vmatprep.subr.mxu0 0.0
    %114 = vmatpush1.msra.mxu0 0.0
    %115 = vmatprep.subr.mxu0 0.0
    %116 = vmatpush1.msra.mxu0 0.0
    %117 = vmatprep.subr.mxu0 0.0
    %118 = vmatpush1.msra.mxu0 0.0
    %119 = vmatprep.subr.mxu0 0.0
    %120 = vmatpush1.msra.mxu0 0.0
    %121 = vmatprep.subr.mxu0 0.0
    %122 = vmatpush1.msra.mxu0 0.0
    %123 = vmatprep.subr.mxu0 0.0
    %124 = vmatpush1.msra.mxu0 0.0
    %125 = vmatprep.mubr.f32.mxu0 0.0
    %126 = vmatmul.mubr.f32.gmra.mrb[0].mxu0 %v59
    %v127 = vpop.f32.mrb[0].mxu0
    %v128 = vadd.f32 %v55, %v127
    %v129 = vpop.f32.mrb[0].mxu0
    %130 = vdwg.mxu0
    %131 = vst [vmem:[#allocation7] sm:$0xff] %v128
    // Predicated region
    $region22: #{tpu_custom_call.1} parent=1 // pred_check
      _
    $region23: #{tpu_custom_call.1} parent=1 // pred_check_branch
      %133 = sbr.rel (0) target = $region25
    $region24: #{tpu_custom_call.1} parent=1 // pred_region
      %s135 = ssub.s32 128, 128
      %136 = vsyncadd [#allocation4], %s135
      %s138 = sshll.u32 [#allocation7], 4
      %s139 = int_to_ptr.vmem [resolvable:$true] %s138
      %141 = dma.vmem_to_hbm [thread:$0]  %s139, 128, %s3, [#allocation4]
    $region25: #{tpu_custom_call.1} parent=1 // pred_fallthru
      _
    // Predicated region
    $region26: #{tpu_custom_call.1} parent=1 // pred_check
      _
    $region27: #{tpu_custom_call.1} parent=1 // pred_check_branch
      %143 = sbr.rel (0) target = $region29
    $region28: #{tpu_custom_call.1} parent=1 // pred_region
      %144 = dma.done [#allocation4], 128
    $region29: #{tpu_custom_call.1} parent=1 // pred_fallthru
      _
    %145 = vsyncpa [#allocation3], 1
    %146 = vsyncpa [#allocation6], 1
    %147 = vsyncpa [#allocation4], 1

</llo_original>
